<compile_context>
chip_gen: v5e
topology: v5e:2x2
jax: 0.10.0
libtpu: 0.0.40
codegen_flags: <defaults>
</compile_context>

<pallas_src>
import functools

import numpy as np
import jax
import jax.numpy as jnp
from jax.experimental import pallas as pl
from jax.experimental.pallas import tpu as pltpu


def fused_conv_gap_head_kernel(x_ref, cw_ref, cb_ref, hw_ref, mask_ref, o_ref, *,
                               w_padded, n_valid):
    """One image row-band: 3x3 conv via in-kernel im2col (+bias+ReLU), masked global-sum
    pooling on the MXU, and the pre-scaled linear head -> partial logits for this band."""
    x = x_ref[...]                                                    # (C, (TH+2)*Wp) bf16
    # Nine shifted views: tap (dy, dx) for output lane j = r*Wp + w reads lane
    # j + dy*Wp + dx.  Static lane slices; halo rows keep every read in-bounds.
    views = [x[:, dy * w_padded + dx: dy * w_padded + dx + n_valid]
             for dy in range(3) for dx in range(3)]
    patches_t = jnp.concatenate(views, axis=0)                        # (9C, Nv) bf16
    act = jnp.dot(cw_ref[...], patches_t,
                  preferred_element_type=jnp.float32)                 # (F, Nv) f32 accum
    act = jnp.maximum(act + cb_ref[...], 0.0)                         # conv bias + ReLU
    # Masked global pooling as an MXU matvec; mask zeroes pad/halo/ragged output lanes.
    pooled = jnp.dot(act.astype(jnp.bfloat16), mask_ref[...],
                     preferred_element_type=jnp.float32)              # (F, 1) partial sum
    # Linear head (weights pre-scaled by 1/(H*W)) -> partial logits for this band.
    o_ref[...] = jnp.dot(hw_ref[...], pooled.astype(jnp.bfloat16),
                         preferred_element_type=jnp.float32)          # (n_class, 1)


def init_params(key, in_chans=4, n_features=32, n_class=2):
    k1, k2, k3, k4 = jax.random.split(key, 4)
    kdim = 3 * 3 * in_chans
    # conv weight flattened in (kh, kw, Cin) -> F order (matches the kernel's tap concat).
    # TODO(synk): real PyTorch/timm conv weights are OIHW and must be permuted to this order.
    conv_w = 0.1 * jax.random.normal(k1, (kdim, n_features), jnp.float32)
    conv_b = 0.1 * jax.random.normal(k2, (1, n_features), jnp.float32)
    head_w = 0.1 * jax.random.normal(k3, (n_features, n_class), jnp.float32)
    head_b = 0.1 * jax.random.normal(k4, (1, n_class), jnp.float32)
    return {"conv_w": conv_w, "conv_b": conv_b, "head_w": head_w, "head_b": head_b}


def hepa_classifier_forward(x_nchw, params, *, max_band_lanes=4096):
    B, C, H, W = x_nchw.shape
    K = 9 * C
    F = params["conv_w"].shape[1]
    n_class = params["head_w"].shape[1]
    Wp = W + 2

    # Row-band height: whole image per grid step when it fits (it almost always does for
    # classifier inputs); otherwise the largest band under ~max_band_lanes lanes.
    TH = H if (H + 2) * Wp <= max_band_lanes else max(1, max_band_lanes // Wp - 2)
    n_bands = pl.cdiv(H, TH)
    NB = (TH + 2) * Wp          # lanes per band (incl. halo rows)
    NV = TH * Wp - 2            # width of the shifted views / conv output lanes

    # ---- raw-input layout: channels on sublanes, zero-framed flattened spatial on lanes.
    xpad = jnp.pad(x_nchw, ((0, 0), (0, 0), (1, 1), (1, 1)))              # (B,C,H+2,W+2)
    rows_needed = n_bands * TH + 2
    xpad = jnp.pad(xpad, ((0, 0), (0, 0), (0, rows_needed - (H + 2)), (0, 0)))
    bands = jnp.stack([xpad[:, :, i * TH:i * TH + TH + 2, :] for i in range(n_bands)],
                      axis=1)                                             # (B,nb,C,TH+2,Wp)
    x_bands = bands.reshape(B, n_bands, C, NB).astype(jnp.bfloat16)

    # ---- tiny host-side constants: per-band valid-lane pooling mask, prepped weights.
    mask = np.zeros((n_bands, NV, 1), np.float32)
    for i in range(n_bands):
        for r in range(TH):
            if i * TH + r < H:
                mask[i, r * Wp:r * Wp + W, 0] = 1.0
    mask = jnp.asarray(mask, jnp.bfloat16)

    conv_wt = params["conv_w"].T.astype(jnp.bfloat16)                     # (F, 9C)
    conv_bt = params["conv_b"].reshape(F, 1)                              # (F, 1) f32
    head_wt = (params["head_w"].T / float(H * W)).astype(jnp.bfloat16)    # (NC, F), /HW folded

    kernel = functools.partial(fused_conv_gap_head_kernel, w_padded=Wp, n_valid=NV)

    partial_logits = pl.pallas_call(
        kernel,
        out_shape=jax.ShapeDtypeStruct((B, n_bands, n_class, 1), jnp.float32),
        grid_spec=pltpu.PrefetchScalarGridSpec(
            num_scalar_prefetch=0,
            grid=(B, n_bands),
            in_specs=[
                pl.BlockSpec((None, None, C, NB), lambda b, m: (b, m, 0, 0)),  # image band
                pl.BlockSpec((F, K), lambda b, m: (0, 0)),                     # conv W^T
                pl.BlockSpec((F, 1), lambda b, m: (0, 0)),                     # conv bias
                pl.BlockSpec((n_class, F), lambda b, m: (0, 0)),               # head W^T / HW
                pl.BlockSpec((None, NV, 1), lambda b, m: (m, 0, 0)),           # pool mask
            ],
            out_specs=pl.BlockSpec((None, None, n_class, 1),
                                   lambda b, m: (b, m, 0, 0)),
        ),
        compiler_params=pltpu.CompilerParams(
            dimension_semantics=("parallel", "parallel"),
        ),
    )(x_bands, conv_wt, conv_bt, head_wt, mask)

    # Tiny cross-band reduction (n_bands * n_class floats per image) + head bias.
    return partial_logits[..., 0].sum(axis=1) + params["head_b"]


if __name__ == "__main__":
    key = jax.random.PRNGKey(0)
    kx, kp = jax.random.split(key)
    # Small NCHW input consistent with an image classifier forward pass.
    x = jax.random.normal(kx, (2, 4, 16, 16), jnp.float32)
    params = init_params(kp, in_chans=4, n_features=32, n_class=2)

    logits = jax.jit(hepa_classifier_forward)(x, params)
    jax.block_until_ready(logits)
    assert logits.shape == (2, 2) and logits.dtype == jnp.float32
    print("KERNEL_OK")
</pallas_src>

<mosaic_0001>
module attributes {stable_mosaic.version = 11 : i64} {
  func.func @fused_conv_gap_head_kernel(%arg0: i32, %arg1: i32, %arg2: memref<1x1x4x324xbf16, #tpu.memory_space<vmem>>, %arg3: memref<32x36xbf16, #tpu.memory_space<vmem>>, %arg4: memref<32x1xf32, #tpu.memory_space<vmem>>, %arg5: memref<2x32xbf16, #tpu.memory_space<vmem>>, %arg6: memref<1x286x1xbf16, #tpu.memory_space<vmem>>, %arg7: memref<1x1x2x1xf32, #tpu.memory_space<vmem>>) attributes {dimension_semantics = [#tpu.dimension_semantics<parallel>, #tpu.dimension_semantics<parallel>], iteration_bounds = array<i64: 2, 1>, scalar_prefetch = 0 : i64, scratch_operands = 0 : i64, tpu.core_type = #tpu.core_type<tc>, window_params = [{transform_indices = @transform_0, window_bounds = array<i64: 1, 1, 4, 324>}, {pipeline_mode = #tpu.pipeline_mode<synchronous>, transform_indices = @transform_1, window_bounds = array<i64: 32, 36>}, {pipeline_mode = #tpu.pipeline_mode<synchronous>, transform_indices = @transform_2, window_bounds = array<i64: 32, 1>}, {pipeline_mode = #tpu.pipeline_mode<synchronous>, transform_indices = @transform_3, window_bounds = array<i64: 2, 32>}, {transform_indices = @transform_4, window_bounds = array<i64: 1, 286, 1>}, {transform_indices = @transform_5, window_bounds = array<i64: 1, 1, 2, 1>}]} {
    %c0 = arith.constant 0 : index
    %c0_0 = arith.constant 0 : index
    %c0_1 = arith.constant 0 : index
    %c0_2 = arith.constant 0 : index
    %0 = vector.load %arg2[%c0, %c0_0, %c0_1, %c0_2] : memref<1x1x4x324xbf16, #tpu.memory_space<vmem>>, vector<1x1x4x324xbf16>
    %1 = vector.shape_cast %0 : vector<1x1x4x324xbf16> to vector<4x324xbf16>
    %2 = vector.extract_strided_slice %1 {offsets = [0, 0], sizes = [4, 286], strides = [1, 1]} : vector<4x324xbf16> to vector<4x286xbf16>
    %3 = vector.extract_strided_slice %1 {offsets = [0, 1], sizes = [4, 286], strides = [1, 1]} : vector<4x324xbf16> to vector<4x286xbf16>
    %4 = vector.extract_strided_slice %1 {offsets = [0, 2], sizes = [4, 286], strides = [1, 1]} : vector<4x324xbf16> to vector<4x286xbf16>
    %5 = vector.extract_strided_slice %1 {offsets = [0, 18], sizes = [4, 286], strides = [1, 1]} : vector<4x324xbf16> to vector<4x286xbf16>
    %6 = vector.extract_strided_slice %1 {offsets = [0, 19], sizes = [4, 286], strides = [1, 1]} : vector<4x324xbf16> to vector<4x286xbf16>
    %7 = vector.extract_strided_slice %1 {offsets = [0, 20], sizes = [4, 286], strides = [1, 1]} : vector<4x324xbf16> to vector<4x286xbf16>
    %8 = vector.extract_strided_slice %1 {offsets = [0, 36], sizes = [4, 286], strides = [1, 1]} : vector<4x324xbf16> to vector<4x286xbf16>
    %9 = vector.extract_strided_slice %1 {offsets = [0, 37], sizes = [4, 286], strides = [1, 1]} : vector<4x324xbf16> to vector<4x286xbf16>
    %10 = vector.extract_strided_slice %1 {offsets = [0, 38], sizes = [4, 286], strides = [1, 1]} : vector<4x324xbf16> to vector<4x286xbf16>
    %11 = tpu.concatenate %2, %3, %4, %5, %6, %7, %8, %9, %10 in 0 : vector<4x286xbf16>, vector<4x286xbf16>, vector<4x286xbf16>, vector<4x286xbf16>, vector<4x286xbf16>, vector<4x286xbf16>, vector<4x286xbf16>, vector<4x286xbf16>, vector<4x286xbf16> -> vector<36x286xbf16>
    %c0_3 = arith.constant 0 : index
    %c0_4 = arith.constant 0 : index
    %12 = vector.load %arg3[%c0_3, %c0_4] : memref<32x36xbf16, #tpu.memory_space<vmem>>, vector<32x36xbf16>
    %cst = arith.constant dense<0.000000e+00> : vector<32x286xf32>
    %13 = tpu.matmul %12, %11, %cst {dimension_numbers = #tpu.dot_dimension_numbers<[1], [0], [0], [1], [0, 0, 1, 1], [], []>} : vector<32x36xbf16>, vector<36x286xbf16>, vector<32x286xf32> -> vector<32x286xf32>
    %c0_5 = arith.constant 0 : index
    %c0_6 = arith.constant 0 : index
    %14 = vector.load %arg4[%c0_5, %c0_6] : memref<32x1xf32, #tpu.memory_space<vmem>>, vector<32x1xf32>
    %15 = vector.broadcast %14 : vector<32x1xf32> to vector<32x286xf32>
    %16 = arith.addf %13, %15 : vector<32x286xf32>
    %cst_7 = arith.constant 0.000000e+00 : f32
    %17 = vector.broadcast %cst_7 : f32 to vector<32x286xf32>
    %18 = arith.maximumf %16, %17 : vector<32x286xf32>
    %19 = arith.truncf %18 : vector<32x286xf32> to vector<32x286xbf16>
    %c0_8 = arith.constant 0 : index
    %c0_9 = arith.constant 0 : index
    %c0_10 = arith.constant 0 : index
    %20 = vector.load %arg6[%c0_8, %c0_9, %c0_10] : memref<1x286x1xbf16, #tpu.memory_space<vmem>>, vector<1x286x1xbf16>
    %21 = vector.shape_cast %20 : vector<1x286x1xbf16> to vector<286x1xbf16>
    %cst_11 = arith.constant dense<0.000000e+00> : vector<32x1xf32>
    %22 = tpu.matmul %19, %21, %cst_11 {dimension_numbers = #tpu.dot_dimension_numbers<[1], [0], [0], [1], [0, 0, 1, 1], [], []>} : vector<32x286xbf16>, vector<286x1xbf16>, vector<32x1xf32> -> vector<32x1xf32>
    %c0_12 = arith.constant 0 : index
    %c0_13 = arith.constant 0 : index
    %23 = vector.load %arg5[%c0_12, %c0_13] : memref<2x32xbf16, #tpu.memory_space<vmem>>, vector<2x32xbf16>
    %24 = arith.truncf %22 : vector<32x1xf32> to vector<32x1xbf16>
    %cst_14 = arith.constant dense<0.000000e+00> : vector<2x1xf32>
    %25 = tpu.matmul %23, %24, %cst_14 {dimension_numbers = #tpu.dot_dimension_numbers<[1], [0], [0], [1], [0, 0, 1, 1], [], []>} : vector<2x32xbf16>, vector<32x1xbf16>, vector<2x1xf32> -> vector<2x1xf32>
    %c0_15 = arith.constant 0 : index
    %c0_16 = arith.constant 0 : index
    %c0_17 = arith.constant 0 : index
    %c0_18 = arith.constant 0 : index
    %26 = vector.load %arg7[%c0_15, %c0_16, %c0_17, %c0_18] : memref<1x1x2x1xf32, #tpu.memory_space<vmem>>, vector<1x1x2x1xf32>
    %27 = vector.shape_cast %26 : vector<1x1x2x1xf32> to vector<2x1xf32>
    %28 = vector.shape_cast %25 : vector<2x1xf32> to vector<1x1x2x1xf32>
    tpu.vector_store %arg7[%c0_15, %c0_16, %c0_17, %c0_18], %28 {strides = array<i32>} : memref<1x1x2x1xf32, #tpu.memory_space<vmem>>, vector<1x1x2x1xf32>,
    return
  }
  func.func @transform_0(%arg0: i32, %arg1: i32) -> (i32, i32, i32, i32) {
    %c0_i32 = arith.constant 0 : i32
    %c0_i32_0 = arith.constant 0 : i32
    %c0_i32_1 = arith.constant 0 : i32
    return %arg0, %arg1, %c0_i32, %c0_i32_0 : i32, i32, i32, i32
  }
  func.func @transform_1(%arg0: i32, %arg1: i32) -> (i32, i32) {
    %c0_i32 = arith.constant 0 : i32
    %c0_i32_0 = arith.constant 0 : i32
    %c0_i32_1 = arith.constant 0 : i32
    return %c0_i32, %c0_i32_0 : i32, i32
  }
  func.func @transform_2(%arg0: i32, %arg1: i32) -> (i32, i32) {
    %c0_i32 = arith.constant 0 : i32
    %c0_i32_0 = arith.constant 0 : i32
    %c0_i32_1 = arith.constant 0 : i32
    return %c0_i32, %c0_i32_0 : i32, i32
  }
  func.func @transform_3(%arg0: i32, %arg1: i32) -> (i32, i32) {
    %c0_i32 = arith.constant 0 : i32
    %c0_i32_0 = arith.constant 0 : i32
    %c0_i32_1 = arith.constant 0 : i32
    return %c0_i32, %c0_i32_0 : i32, i32
  }
  func.func @transform_4(%arg0: i32, %arg1: i32) -> (i32, i32, i32) {
    %c0_i32 = arith.constant 0 : i32
    %c0_i32_0 = arith.constant 0 : i32
    %c0_i32_1 = arith.constant 0 : i32
    return %arg1, %c0_i32, %c0_i32_0 : i32, i32, i32
  }
  func.func @transform_5(%arg0: i32, %arg1: i32) -> (i32, i32, i32, i32) {
    %c0_i32 = arith.constant 0 : i32
    %c0_i32_0 = arith.constant 0 : i32
    %c0_i32_1 = arith.constant 0 : i32
    return %arg0, %arg1, %c0_i32, %c0_i32_0 : i32, i32, i32, i32
  }
}

</mosaic_0001>

<llo_original>
// kernel: hepa_classifier_forward.1
$region0: #{hepa_classifier_forward.1}
  #allocation0 [shape = 'u32[]', space=smem, size = 0x4, offset = 0x4, fixed_abs, tag = 'smem constant byte address 0x4 - core index']
  #allocation1 [shape = 'u32[72,128]{1,0:T(1,128)}', space=vmem, size = 0x9000, scoped, tag = 'internal scratch']
  %s0 = inlined_call_operand.vmem [shape: bf16[2,1,4,324], index: 0, kind: input, shape index: {}]
  %s1 = inlined_call_operand.vmem [shape: bf16[32,36], index: 1, kind: input, shape index: {}]
  %s2 = inlined_call_operand.vmem [shape: f32[32,1], index: 2, kind: input, shape index: {}]
  %s3 = inlined_call_operand.vmem [shape: bf16[2,32], index: 3, kind: input, shape index: {}]
  %s4 = inlined_call_operand.vmem [shape: bf16[1,286,1], index: 4, kind: input, shape index: {}]
  %s5 = inlined_call_operand.vmem [shape: f32[2,1,2,1], index: 5, kind: output, shape index: {}]
  %s6 = sld [smem:[#allocation0]]
  $region53: #{hepa_classifier_forward.1} parent=0
    _
  %s8 = ssub.s32 1, %s6
  %s9 = scalar_select 0, %s8, %s6
  loop: start=0, step=1, limit=4
  $region2: #{hepa_classifier_forward.1} parent=0 // loop_pre_header
    _
  $region3: #{hepa_classifier_forward.1} parent=0 // loop_header
    %s11 = sphi 0, %s15
    %p12 = scmp.ge.s32.totalorder %s11, 4
    %s18 = sphi 0, %s30
    %s19 = sphi 0, %s26
    %s20 = sphi 0, %s18
    %s21 = sphi 0, %s19
    %s22 = sphi 0, %s20
    %s23 = sphi 0, %s21
    %s35 = sphi 0, %s37
    %s38 = sphi 0, %s35
    %s39 = sphi 0, %s38
    %s55 = sphi 0, %s39
    %s59 = sphi 0, %s59
    %s61 = sphi 0, %s59
    %s62 = sphi 0, %s61
    %s76 = sphi 0, %s62
    %s80 = sphi 0, %s80
    %s82 = sphi 0, %s80
    %s83 = sphi 0, %s82
    %s97 = sphi 0, %s83
    %s101 = sphi 0, %s101
    %s103 = sphi 0, %s101
    %s104 = sphi 0, %s103
    %s118 = sphi 0, %s104
    %s124 = sphi 0, %s126
    %s127 = sphi 0, %s124
    %s128 = sphi 0, %s127
    %s144 = sphi 0, %s128
    %s152 = sphi 0, %s154
    %s155 = sphi 0, %s152
    %s156 = sphi 0, %s155
    %s172 = sphi 0, %s156
  $region4: #{hepa_classifier_forward.1} parent=0 // loop_header_branch
    %14 = sbr.rel (%p12) target = $region8
  $region5: #{hepa_classifier_forward.1} parent=0 // loop_body
    %s16 = ssub.s32 %s11, 1
    %s17 = ssub.s32 %s11, 2
    %s24 = sadd.s32 1, %s19
    %p25 = scmp.ge.s32.totalorder %s24, 1
    %s26 = scalar_select %p25, 0, %s24
    %s27 = sadd.s32 1, %s18
    %s28 = scalar_select %p25, %s27, %s18
    %p29 = scmp.ge.s32.totalorder %s28, 2
    %s30 = scalar_select %p29, 0, %s28
    %s31 = ssub.s32 %s18, %s30
    %s32 = ssub.s32 %s19, %s26
    %s33 = sor.u32 %s31, %s32
    %p34 = scmp.eq.s32.totalorder %s33, 0
    %s36 = sadd.s32 %s35, 1
    %s37 = scalar_select %p34, %s35, %s36
    %p40 = pneg %p34
    %p41 = scmp.eq.s32.totalorder %s11, 1
    %p42 = por %p40, %p41
    %p43 = scmp.ne.s32.totalorder %s35, %s38
    %p44 = scmp.eq.s32.totalorder %s11, 0
    %p45 = por %p43, %p44
    %p46 = scmp.ne.s32.totalorder %s35, %s38
    %p47 = scmp.eq.s32.totalorder %s16, 1
    %p48 = por %p46, %p47
    %p49 = scmp.ne.s32.totalorder %s38, %s39
    %p50 = scmp.eq.s32.totalorder %s16, 0
    %p51 = por %p49, %p50
    %p52 = scmp.ne.s32.totalorder %s38, %s39
    %p53 = scmp.eq.s32.totalorder %s17, 1
    %p54 = por %p52, %p53
    %p56 = scmp.ne.s32.totalorder %s39, %s55
    %p57 = scmp.eq.s32.totalorder %s17, 0
    %p58 = por %p56, %p57
    %s60 = sadd.s32 %s59, 1
    %p63 = scmp.eq.s32.totalorder %s11, 1
    %p64 = scmp.ne.s32.totalorder %s59, %s61
    %p65 = scmp.eq.s32.totalorder %s11, 0
    %p66 = por %p64, %p65
    %p67 = scmp.ne.s32.totalorder %s59, %s61
    %p68 = scmp.eq.s32.totalorder %s16, 1
    %p69 = por %p67, %p68
    %p70 = scmp.ne.s32.totalorder %s61, %s62
    %p71 = scmp.eq.s32.totalorder %s16, 0
    %p72 = por %p70, %p71
    %p73 = scmp.ne.s32.totalorder %s61, %s62
    %p74 = scmp.eq.s32.totalorder %s17, 1
    %p75 = por %p73, %p74
    %p77 = scmp.ne.s32.totalorder %s62, %s76
    %p78 = scmp.eq.s32.totalorder %s17, 0
    %p79 = por %p77, %p78
    %s81 = sadd.s32 %s80, 1
    %p84 = scmp.eq.s32.totalorder %s11, 1
    %p85 = scmp.ne.s32.totalorder %s80, %s82
    %p86 = scmp.eq.s32.totalorder %s11, 0
    %p87 = por %p85, %p86
    %p88 = scmp.ne.s32.totalorder %s80, %s82
    %p89 = scmp.eq.s32.totalorder %s16, 1
    %p90 = por %p88, %p89
    %p91 = scmp.ne.s32.totalorder %s82, %s83
    %p92 = scmp.eq.s32.totalorder %s16, 0
    %p93 = por %p91, %p92
    %p94 = scmp.ne.s32.totalorder %s82, %s83
    %p95 = scmp.eq.s32.totalorder %s17, 1
    %p96 = por %p94, %p95
    %p98 = scmp.ne.s32.totalorder %s83, %s97
    %p99 = scmp.eq.s32.totalorder %s17, 0
    %p100 = por %p98, %p99
    %s102 = sadd.s32 %s101, 1
    %p105 = scmp.eq.s32.totalorder %s11, 1
    %p106 = scmp.ne.s32.totalorder %s101, %s103
    %p107 = scmp.eq.s32.totalorder %s11, 0
    %p108 = por %p106, %p107
    %p109 = scmp.ne.s32.totalorder %s101, %s103
    %p110 = scmp.eq.s32.totalorder %s16, 1
    %p111 = por %p109, %p110
    %p112 = scmp.ne.s32.totalorder %s103, %s104
    %p113 = scmp.eq.s32.totalorder %s16, 0
    %p114 = por %p112, %p113
    %p115 = scmp.ne.s32.totalorder %s103, %s104
    %p116 = scmp.eq.s32.totalorder %s17, 1
    %p117 = por %p115, %p116
    %p119 = scmp.ne.s32.totalorder %s104, %s118
    %p120 = scmp.eq.s32.totalorder %s17, 0
    %p121 = por %p119, %p120
    %s122 = ssub.s32 %s19, %s26
    %p123 = scmp.eq.s32.totalorder %s122, 0
    %s125 = sadd.s32 %s124, 1
    %s126 = scalar_select %p123, %s124, %s125
    %p129 = pneg %p123
    %p130 = scmp.eq.s32.totalorder %s11, 1
    %p131 = por %p129, %p130
    %p132 = scmp.ne.s32.totalorder %s124, %s127
    %p133 = scmp.eq.s32.totalorder %s11, 0
    %p134 = por %p132, %p133
    %p135 = scmp.ne.s32.totalorder %s124, %s127
    %p136 = scmp.eq.s32.totalorder %s16, 1
    %p137 = por %p135, %p136
    %p138 = scmp.ne.s32.totalorder %s127, %s128
    %p139 = scmp.eq.s32.totalorder %s16, 0
    %p140 = por %p138, %p139
    %p141 = scmp.ne.s32.totalorder %s127, %s128
    %p142 = scmp.eq.s32.totalorder %s17, 1
    %p143 = por %p141, %p142
    %p145 = scmp.ne.s32.totalorder %s128, %s144
    %p146 = scmp.eq.s32.totalorder %s17, 0
    %p147 = por %p145, %p146
    %s148 = ssub.s32 %s18, %s30
    %s149 = ssub.s32 %s19, %s26
    %s150 = sor.u32 %s148, %s149
    %p151 = scmp.eq.s32.totalorder %s150, 0
    %s153 = sadd.s32 %s152, 1
    %s154 = scalar_select %p151, %s152, %s153
    %p157 = pneg %p151
    %p158 = scmp.eq.s32.totalorder %s11, 1
    %p159 = por %p157, %p158
    %p160 = scmp.ne.s32.totalorder %s152, %s155
    %p161 = scmp.eq.s32.totalorder %s11, 0
    %p162 = por %p160, %p161
    %p163 = scmp.ne.s32.totalorder %s152, %s155
    %p164 = scmp.eq.s32.totalorder %s16, 1
    %p165 = por %p163, %p164
    %p166 = scmp.ne.s32.totalorder %s155, %s156
    %p167 = scmp.eq.s32.totalorder %s16, 0
    %p168 = por %p166, %p167
    %p169 = scmp.ne.s32.totalorder %s155, %s156
    %p170 = scmp.eq.s32.totalorder %s17, 1
    %p171 = por %p169, %p170
    %p173 = scmp.ne.s32.totalorder %s156, %s172
    %p174 = scmp.eq.s32.totalorder %s17, 0
    %p175 = por %p173, %p174
    %p176 = scmp.le.s32.totalorder 1, %s11
    %p177 = scmp.lt.s32.totalorder %s11, 3
    %p178 = pnand %p176, %p177
    %p179 = pneg %p178
    // Predicated region
    $region9: #{hepa_classifier_forward.1} parent=5 // pred_check
      _
    $region10: #{hepa_classifier_forward.1} parent=5 // pred_check_branch
      %181 = sbr.rel (%p178) target = $region12
    $region11: #{hepa_classifier_forward.1} parent=5 // pred_region
      %s182 = ssub.s32 %s11, 1
      // Predicated region
      $region13: #{hepa_classifier_forward.1} parent=11 // pred_check
        %p183 = pneg %p72
      $region14: #{hepa_classifier_forward.1} parent=11 // pred_check_branch
        %185 = sbr.rel (%p183) target = $region16
      $region15: #{hepa_classifier_forward.1} parent=11 // pred_region
        _
      $region16: #{hepa_classifier_forward.1} parent=11 // pred_fallthru
        _
      // Predicated region
      $region17: #{hepa_classifier_forward.1} parent=11 // pred_check
        %p186 = pneg %p93
      $region18: #{hepa_classifier_forward.1} parent=11 // pred_check_branch
        %188 = sbr.rel (%p186) target = $region20
      $region19: #{hepa_classifier_forward.1} parent=11 // pred_region
        _
      $region20: #{hepa_classifier_forward.1} parent=11 // pred_fallthru
        _
      // Predicated region
      $region21: #{hepa_classifier_forward.1} parent=11 // pred_check
        %p189 = pneg %p114
      $region22: #{hepa_classifier_forward.1} parent=11 // pred_check_branch
        %191 = sbr.rel (%p189) target = $region24
      $region23: #{hepa_classifier_forward.1} parent=11 // pred_region
        _
      $region24: #{hepa_classifier_forward.1} parent=11 // pred_fallthru
        _
      // Predicated region
      $region25: #{hepa_classifier_forward.1} parent=11 // pred_check
        %p192 = pneg %p140
      $region26: #{hepa_classifier_forward.1} parent=11 // pred_check_branch
        %194 = sbr.rel (%p192) target = $region28
      $region27: #{hepa_classifier_forward.1} parent=11 // pred_region
        %p195 = scmp.lt.s32.totalorder %s21, 0
        %s196 = scalar_select %p195, %s21, 0
        %s197 = smul.addr %s196, 36
        %s198 = smul.addr %s197, 4
        %s199 = scalar_lea.vmem %s4, %s198
      $region28: #{hepa_classifier_forward.1} parent=11 // pred_fallthru
        _
    $region12: #{hepa_classifier_forward.1} parent=5 // pred_fallthru
      _
    %p200 = scmp.lt.s32.totalorder %s11, 2
    // Predicated region
    $region29: #{hepa_classifier_forward.1} parent=5 // pred_check
      %p201 = pneg %p200
    $region30: #{hepa_classifier_forward.1} parent=5 // pred_check_branch
      %203 = sbr.rel (%p201) target = $region32
    $region31: #{hepa_classifier_forward.1} parent=5 // pred_region
      // Predicated region
      $region33: #{hepa_classifier_forward.1} parent=31 // pred_check
        %p204 = pneg %p45
      $region34: #{hepa_classifier_forward.1} parent=31 // pred_check_branch
        %206 = sbr.rel (%p204) target = $region36
      $region35: #{hepa_classifier_forward.1} parent=31 // pred_region
        %p207 = scmp.lt.s32.totalorder %s18, 1
        %s208 = scalar_select %p207, %s18, 1
        %p209 = scmp.lt.s32.totalorder %s19, 0
        %s210 = scalar_select %p209, %s19, 0
        %s211 = smul.addr %s210, 3
        %s212 = smul.addr %s208, 3
        %s213 = sadd.s32 %s211, %s212
        %s214 = smul.addr %s213, 2
        %s215 = scalar_lea.vmem %s0, %s214
      $region36: #{hepa_classifier_forward.1} parent=31 // pred_fallthru
        _
    $region32: #{hepa_classifier_forward.1} parent=5 // pred_fallthru
      _
    %p216 = scmp.le.s32.totalorder 1, %s11
    %p217 = scmp.lt.s32.totalorder %s11, 3
    %p218 = pnand %p216, %p217
    %p219 = pneg %p218
    // Predicated region
    $region37: #{hepa_classifier_forward.1} parent=5 // pred_check
      _
    $region38: #{hepa_classifier_forward.1} parent=5 // pred_check_branch
      %221 = sbr.rel (%p218) target = $region40
    $region39: #{hepa_classifier_forward.1} parent=5 // pred_region
      %s222 = ssub.s32 %s11, 1
      %p223 = scmp.lt.s32.totalorder %s20, 1
      %s224 = scalar_select %p223, %s20, 1
      %p225 = scmp.lt.s32.totalorder %s21, 0
      %s226 = scalar_select %p225, %s21, 0
      %s227 = smul.addr %s226, 3
      %s228 = smul.addr %s224, 3
      %s229 = sadd.s32 %s227, %s228
      %s230 = smul.addr %s229, 2
      %s231 = scalar_lea.vmem %s0, %s230
      %p232 = pneg %p51
      %p233 = pneg %p48
      %p234 = pneg %p72
      %p235 = pneg %p69
      %p236 = pneg %p93
      %p237 = pneg %p90
      %p238 = pneg %p114
      %p239 = pneg %p111
      %p240 = scmp.lt.s32.totalorder %s21, 0
      %s241 = scalar_select %p240, %s21, 0
      %s242 = smul.addr %s241, 36
      %s243 = smul.addr %s242, 4
      %s244 = scalar_lea.vmem %s4, %s243
      %p245 = pneg %p140
      %p246 = pneg %p137
      %p247 = pneg %p168
      %p248 = pneg %p165
      %p249 = scmp.lt.s32.totalorder %s20, 1
      %s250 = scalar_select %p249, %s20, 1
      %p251 = scmp.lt.s32.totalorder %s21, 0
      %s252 = scalar_select %p251, %s21, 0
      %s253 = sadd.s32 %s252, %s250
      %s254 = smul.addr %s253, 2
      %s255 = scalar_lea.vmem %s5, %s254
      %p256 = scmp.lt.s32.totalorder %s20, 1
      %s257 = scalar_select %p256, %s20, 1
      %p258 = scmp.lt.s32.totalorder %s21, 0
      %s259 = scalar_select %p258, %s21, 0
      %s260 = smul.addr %s259, 3
      %s261 = smul.addr %s257, 3
      %s262 = sadd.s32 %s260, %s261
      %s263 = smul.addr %s262, 2
      %s264 = scalar_lea.vmem %s0, %s263
      %p265 = scmp.lt.s32.totalorder %s21, 0
      %s266 = scalar_select %p265, %s21, 0
      %s267 = smul.addr %s266, 36
      %s268 = smul.addr %s267, 4
      %s269 = scalar_lea.vmem %s4, %s268
      %p270 = scmp.lt.s32.totalorder %s20, 1
      %s271 = scalar_select %p270, %s20, 1
      %p272 = scmp.lt.s32.totalorder %s21, 0
      %s273 = scalar_select %p272, %s21, 0
      %s274 = sadd.s32 %s273, %s271
      %s275 = smul.addr %s274, 2
      %s276 = scalar_lea.vmem %s5, %s275
      %v278 = vld [vmem:[%s264] sm:$0x3f]
      %280 = vst [vmem:[#allocation1] ss:$4 sm:$0xff] %v278
      %v281 = vld.sshfl [vmem:[#allocation1] sm:$0xff pattern:$0x73625140]
      %v282 = vld.sshfl [vmem:[#allocation1 + $0x8] sm:$0xff pattern:$0x73625140]
      %v283 = vld.sshfl [vmem:[#allocation1 + $0x10] sm:$0xff pattern:$0x73625140]
      %s284 = scalar_lea.vmem [#allocation1], 1
      %285 = vst [vmem:[%s284] ss:$4 sm:$0xff] %v278
      %v286 = vld.sshfl [vmem:[#allocation1] sm:$0xff pattern:$0x73625140]
      %v288 = vld.sshfl [vmem:[#allocation1 + $0x8] sm:$0xff pattern:$0x73625140]
      %v290 = vld.sshfl [vmem:[#allocation1 + $0x10] sm:$0xff pattern:$0x73625140]
      %292 = vrot.lane.b32.xlu0 %v286, 127
      %v293 = vpop.permute.xlu0 %292
      %294 = vrot.lane.b32.xlu0 %v288, 127
      %v295 = vpop.permute.xlu0 %294
      %296 = vrot.lane.b32.xlu0 %v290, 127
      %v297 = vpop.permute.xlu0 %296
      %vm298 = vcmask 1039360
      %v299 = vsel %vm298, %v293, %v295
      %v300 = vsel %vm298, %v295, %v297
      %s301 = scalar_lea.vmem [#allocation1], 2
      %302 = vst [vmem:[%s301] ss:$4 sm:$0xff] %v278
      %v303 = vld.sshfl [vmem:[#allocation1] sm:$0xff pattern:$0x73625140]
      %v305 = vld.sshfl [vmem:[#allocation1 + $0x8] sm:$0xff pattern:$0x73625140]
      %v307 = vld.sshfl [vmem:[#allocation1 + $0x10] sm:$0xff pattern:$0x73625140]
      %309 = vrot.lane.b32.xlu0 %v303, 126
      %v310 = vpop.permute.xlu0 %309
      %311 = vrot.lane.b32.xlu0 %v305, 126
      %v312 = vpop.permute.xlu0 %311
      %313 = vrot.lane.b32.xlu0 %v307, 126
      %v314 = vpop.permute.xlu0 %313
      %vm315 = vcmask 1031168
      %v316 = vsel %vm315, %v310, %v312
      %v317 = vsel %vm315, %v312, %v314
      %s318 = scalar_lea.vmem [#allocation1], 3
      %319 = vst [vmem:[%s318] ss:$4 sm:$0xff] %v278
      %v320 = vld.sshfl [vmem:[#allocation1] sm:$0xff pattern:$0x73625140]
      %v322 = vld.sshfl [vmem:[#allocation1 + $0x8] sm:$0xff pattern:$0x73625140]
      %v324 = vld.sshfl [vmem:[#allocation1 + $0x10] sm:$0xff pattern:$0x73625140]
      %326 = vrot.lane.b32.xlu0 %v320, 110
      %v327 = vpop.permute.xlu0 %326
      %328 = vrot.lane.b32.xlu0 %v322, 110
      %v329 = vpop.permute.xlu0 %328
      %330 = vrot.lane.b32.xlu0 %v324, 110
      %v331 = vpop.permute.xlu0 %330
      %vm332 = vcmask 900096
      %v333 = vsel %vm332, %v327, %v329
      %v334 = vsel %vm332, %v329, %v331
      %335 = vst [vmem:[#allocation1] ss:$4 sm:$0xff] %v278
      %v336 = vld.sshfl [vmem:[#allocation1] sm:$0xff pattern:$0x73625140]
      %v338 = vld.sshfl [vmem:[#allocation1 + $0x8] sm:$0xff pattern:$0x73625140]
      %v340 = vld.sshfl [vmem:[#allocation1 + $0x10] sm:$0xff pattern:$0x73625140]
      %342 = vrot.lane.b32.xlu0 %v336, 109
      %v343 = vpop.permute.xlu0 %342
      %344 = vrot.lane.b32.xlu0 %v338, 109
      %v345 = vpop.permute.xlu0 %344
      %346 = vrot.lane.b32.xlu0 %v340, 109
      %v347 = vpop.permute.xlu0 %346
      %vm348 = vcmask 891904
      %v349 = vsel %vm348, %v343, %v345
      %v350 = vsel %vm348, %v345, %v347
      %s351 = scalar_lea.vmem [#allocation1], 1
      %352 = vst [vmem:[%s351] ss:$4 sm:$0xff] %v278
      %v353 = vld.sshfl [vmem:[#allocation1] sm:$0xff pattern:$0x73625140]
      %v355 = vld.sshfl [vmem:[#allocation1 + $0x8] sm:$0xff pattern:$0x73625140]
      %v357 = vld.sshfl [vmem:[#allocation1 + $0x10] sm:$0xff pattern:$0x73625140]
      %359 = vrot.lane.b32.xlu0 %v353, 108
      %v360 = vpop.permute.xlu0 %359
      %361 = vrot.lane.b32.xlu0 %v355, 108
      %v362 = vpop.permute.xlu0 %361
      %363 = vrot.lane.b32.xlu0 %v357, 108
      %v364 = vpop.permute.xlu0 %363
      %vm365 = vcmask 883712
      %v366 = vsel %vm365, %v360, %v362
      %v367 = vsel %vm365, %v362, %v364
      %s368 = scalar_lea.vmem [#allocation1], 2
      %369 = vst [vmem:[%s368] ss:$4 sm:$0xff] %v278
      %v370 = vld.sshfl [vmem:[#allocation1] sm:$0xff pattern:$0x73625140]
      %v372 = vld.sshfl [vmem:[#allocation1 + $0x8] sm:$0xff pattern:$0x73625140]
      %v374 = vld.sshfl [vmem:[#allocation1 + $0x10] sm:$0xff pattern:$0x73625140]
      %376 = vrot.lane.b32.xlu0 %v370, 92
      %v377 = vpop.permute.xlu0 %376
      %378 = vrot.lane.b32.xlu0 %v372, 92
      %v379 = vpop.permute.xlu0 %378
      %380 = vrot.lane.b32.xlu0 %v374, 92
      %v381 = vpop.permute.xlu0 %380
      %vm382 = vcmask 752640
      %v383 = vsel %vm382, %v377, %v379
      %v384 = vsel %vm382, %v379, %v381
      %s385 = scalar_lea.vmem [#allocation1], 3
      %386 = vst [vmem:[%s385] ss:$4 sm:$0xff] %v278
      %v387 = vld.sshfl [vmem:[#allocation1] sm:$0xff pattern:$0x73625140]
      %v389 = vld.sshfl [vmem:[#allocation1 + $0x8] sm:$0xff pattern:$0x73625140]
      %v391 = vld.sshfl [vmem:[#allocation1 + $0x10] sm:$0xff pattern:$0x73625140]
      %393 = vrot.lane.b32.xlu0 %v387, 91
      %v394 = vpop.permute.xlu0 %393
      %395 = vrot.lane.b32.xlu0 %v389, 91
      %v396 = vpop.permute.xlu0 %395
      %397 = vrot.lane.b32.xlu0 %v391, 91
      %v398 = vpop.permute.xlu0 %397
      %vm399 = vcmask 744448
      %v400 = vsel %vm399, %v394, %v396
      %v401 = vsel %vm399, %v396, %v398
      %402 = vst [vmem:[#allocation1] ss:$4 sm:$0xff] %v278
      %v403 = vld.sshfl [vmem:[#allocation1] sm:$0xff pattern:$0x73625140]
      %v405 = vld.sshfl [vmem:[#allocation1 + $0x8] sm:$0xff pattern:$0x73625140]
      %v407 = vld.sshfl [vmem:[#allocation1 + $0x10] sm:$0xff pattern:$0x73625140]
      %409 = vrot.lane.b32.xlu0 %v403, 90
      %v410 = vpop.permute.xlu0 %409
      %411 = vrot.lane.b32.xlu0 %v405, 90
      %v412 = vpop.permute.xlu0 %411
      %413 = vrot.lane.b32.xlu0 %v407, 90
      %v414 = vpop.permute.xlu0 %413
      %vm415 = vcmask 736256
      %v416 = vsel %vm415, %v410, %v412
      %v417 = vsel %vm415, %v412, %v414
      %vm418 = vcmask 1041408
      %v420 = vsel %vm418, %v281, %v299
      %v422 = vsel %vm418, %v282, %v300
      %v424 = vsel %vm418, %v283, %v297
      %vm425 = vcmask 1043456
      %v427 = vsel %vm425, %v420, %v316
      %v429 = vsel %vm425, %v422, %v317
      %v431 = vsel %vm425, %v424, %v314
      %vm432 = vcmask 1045504
      %v434 = vsel %vm432, %v427, %v333
      %v437 = vsel %vm432, %v429, %v334
      %v440 = vsel %vm432, %v431, %v331
      %v444 = vsel %vm418, %v349, %v366
      %v447 = vsel %vm418, %v350, %v367
      %v450 = vsel %vm418, %v347, %v364
      %v452 = vsel %vm425, %v444, %v383
      %v454 = vsel %vm425, %v447, %v384
      %v456 = vsel %vm425, %v450, %v381
      %v458 = vsel %vm432, %v452, %v400
      %v461 = vsel %vm432, %v454, %v401
      %v464 = vsel %vm432, %v456, %v398
      %v466 = vld [vmem:[%s1] sm:$0xf]
      %v467 = vld [vmem:[%s1 + $0x4] sm:$0xf]
      %v468 = vld [vmem:[%s1 + $0x8] sm:$0xf]
      %v469 = vld [vmem:[%s1 + $0xc] sm:$0xf]
      %v470 = vld [vmem:[%s2] sm:$0xff]
      %v471 = vld [vmem:[%s2 + $0x8] sm:$0xff]
      %v472 = vld [vmem:[%s2 + $0x10] sm:$0xff]
      %v473 = vld [vmem:[%s2 + $0x18] sm:$0xff]
      %475 = vset.pattern.permute.xlu0 0
      %476 = vperm.xlu0 %475, %v470
      %v477 = vpop.permute.xlu0 %476
      %480 = vset.pattern.permute.xlu0 0
      %481 = vperm.xlu0 %480, %v471
      %v482 = vpop.permute.xlu0 %481
      %485 = vset.pattern.permute.xlu0 0
      %486 = vperm.xlu0 %485, %v472
      %v487 = vpop.permute.xlu0 %486
      %490 = vset.pattern.permute.xlu0 0
      %491 = vperm.xlu0 %490, %v473
      %v492 = vpop.permute.xlu0 %491
      %v498 = vunpack.c.l.b16 %v466
      %v499 = vunpack.c.l.b16 %v467
      %v500 = vunpack.c.l.b16 %v468
      %v501 = vunpack.c.l.b16 %v469
      %v502 = vpack.c.b16 %v499, %v498
      %v503 = vpack.c.b16 %v501, %v500
      %vm504 = vcmask 293888
      %v506 = vsel %vm504, %v502, 0
      %v509 = vsel %vm504, %v503, 0
      %v512 = vsel %vm418, %v416, 0
      %v515 = vsel %vm418, %v417, 0
      %v518 = vsel %vm418, %v414, 0
      %520 = vmatpush.bf16.msra.mxu0 0
      %521 = vmatpush.bf16.msra.mxu0 0
      %522 = vmatpush.bf16.msra.mxu0 0
      %523 = vmatpush.bf16.msra.mxu0 0
      %524 = vmatpush.bf16.msra.mxu0 0
      %525 = vmatpush.bf16.msra.mxu0 %v512
      %526 = vmatpush.bf16.msra.mxu0 %v458
      %527 = vmatpush.bf16.msra.mxu0 %v434
      %528 = vmatmul.bf16.gmra.mxu0 %v506
      %v529 = vpop.f32.mrf.mxu0
      %v530 = vadd.f32 %v477, %v529
      %v531 = vpop.f32.mrf.mxu0
      %v532 = vadd.f32 %v482, %v531
      %533 = vmatmul.bf16.gmra.mxu0 %v509
      %v534 = vpop.f32.mrf.mxu0
      %v535 = vadd.f32 %v487, %v534
      %v536 = vpop.f32.mrf.mxu0
      %v537 = vadd.f32 %v492, %v536
      %538 = vdwg.mxu0
      %539 = vmatpush.bf16.msra.mxu0 0
      %540 = vmatpush.bf16.msra.mxu0 0
      %541 = vmatpush.bf16.msra.mxu0 0
      %542 = vmatpush.bf16.msra.mxu0 0
      %543 = vmatpush.bf16.msra.mxu0 0
      %544 = vmatpush.bf16.msra.mxu0 %v515
      %545 = vmatpush.bf16.msra.mxu0 %v461
      %546 = vmatpush.bf16.msra.mxu0 %v437
      %547 = vmatmul.bf16.gmra.mxu0 %v506
      %v548 = vpop.f32.mrf.mxu0
      %v549 = vadd.f32 %v477, %v548
      %v550 = vpop.f32.mrf.mxu0
      %v551 = vadd.f32 %v482, %v550
      %552 = vmatmul.bf16.gmra.mxu0 %v509
      %v553 = vpop.f32.mrf.mxu0
      %v554 = vadd.f32 %v487, %v553
      %v555 = vpop.f32.mrf.mxu0
      %v556 = vadd.f32 %v492, %v555
      %557 = vdwg.mxu0
      %558 = vmatpush.bf16.msra.mxu0 0
      %559 = vmatpush.bf16.msra.mxu0 0
      %560 = vmatpush.bf16.msra.mxu0 0
      %561 = vmatpush.bf16.msra.mxu0 0
      %562 = vmatpush.bf16.msra.mxu0 0
      %563 = vmatpush.bf16.msra.mxu0 %v518
      %564 = vmatpush.bf16.msra.mxu0 %v464
      %565 = vmatpush.bf16.msra.mxu0 %v440
      %566 = vmatmul.bf16.gmra.mxu0 %v506
      %v567 = vpop.f32.mrf.mxu0
      %v568 = vadd.f32 %v477, %v567
      %v569 = vpop.f32.mrf.mxu0
      %v570 = vadd.f32 %v482, %v569
      %571 = vmatmul.bf16.gmra.mxu0 %v509
      %v572 = vpop.f32.mrf.mxu0
      %v573 = vadd.f32 %v487, %v572
      %v574 = vpop.f32.mrf.mxu0
      %v575 = vadd.f32 %v492, %v574
      %576 = vdwg.mxu0
      %v577 = vmax.f32 %v530, 0.0
      %v578 = vmax.f32 %v549, 0.0
      %v579 = vmax.f32 %v568, 0.0
      %v580 = vmax.f32 %v532, 0.0
      %v581 = vmax.f32 %v551, 0.0
      %v582 = vmax.f32 %v570, 0.0
      %v583 = vmax.f32 %v535, 0.0
      %v584 = vmax.f32 %v554, 0.0
      %v585 = vmax.f32 %v573, 0.0
      %v586 = vmax.f32 %v537, 0.0
      %v587 = vmax.f32 %v556, 0.0
      %v588 = vmax.f32 %v575, 0.0
      %v589 = vpack.c.bf16 %v580, %v577
      %v590 = vpack.c.bf16 %v581, %v578
      %v591 = vpack.c.bf16 %v582, %v579
      %v592 = vpack.c.bf16 %v586, %v583
      %v593 = vpack.c.bf16 %v587, %v584
      %v594 = vpack.c.bf16 %v588, %v585
      %v595 = vld [vmem:[%s269] sm:$0xf]
      %v596 = vld [vmem:[%s269 + $0x4] sm:$0xf]
      %v597 = vld [vmem:[%s269 + $0x8] sm:$0xf]
      %v598 = vld [vmem:[%s269 + $0xc] sm:$0xf]
      %v599 = vld [vmem:[%s269 + $0x10] sm:$0xf]
      %v600 = vld [vmem:[%s269 + $0x14] sm:$0xf]
      %v601 = vld [vmem:[%s269 + $0x18] sm:$0xf]
      %v602 = vld [vmem:[%s269 + $0x1c] sm:$0xf]
      %v603 = vld [vmem:[%s269 + $0x20] sm:$0xf]
      %v604 = vld [vmem:[%s269 + $0x24] sm:$0xf]
      %v605 = vld [vmem:[%s269 + $0x28] sm:$0xf]
      %v606 = vld [vmem:[%s269 + $0x2c] sm:$0xf]
      %v607 = vld [vmem:[%s269 + $0x30] sm:$0xf]
      %v608 = vld [vmem:[%s269 + $0x34] sm:$0xf]
      %v609 = vld [vmem:[%s269 + $0x38] sm:$0xf]
      %v610 = vld [vmem:[%s269 + $0x3c] sm:$0xf]
      %v611 = vld [vmem:[%s269 + $0x40] sm:$0xf]
      %v612 = vld [vmem:[%s269 + $0x44] sm:$0xf]
      %v613 = vld [vmem:[%s269 + $0x48] sm:$0xf]
      %v614 = vld [vmem:[%s269 + $0x4c] sm:$0xf]
      %v615 = vld [vmem:[%s269 + $0x50] sm:$0xf]
      %v616 = vld [vmem:[%s269 + $0x54] sm:$0xf]
      %v617 = vld [vmem:[%s269 + $0x58] sm:$0xf]
      %v618 = vld [vmem:[%s269 + $0x5c] sm:$0xf]
      %v619 = vld [vmem:[%s269 + $0x60] sm:$0xf]
      %v620 = vld [vmem:[%s269 + $0x64] sm:$0xf]
      %v621 = vld [vmem:[%s269 + $0x68] sm:$0xf]
      %v622 = vld [vmem:[%s269 + $0x6c] sm:$0xf]
      %v623 = vld [vmem:[%s269 + $0x70] sm:$0xf]
      %v624 = vld [vmem:[%s269 + $0x74] sm:$0xf]
      %v625 = vld [vmem:[%s269 + $0x78] sm:$0xf]
      %v626 = vld [vmem:[%s269 + $0x7c] sm:$0xf]
      %v627 = vld [vmem:[%s269 + $0x80] sm:$0xf]
      %v628 = vld [vmem:[%s269 + $0x84] sm:$0xf]
      %v629 = vld [vmem:[%s269 + $0x88] sm:$0xf]
      %v630 = vld [vmem:[%s269 + $0x8c] sm:$0x7]
      %v667 = vunpack.c.l.b16 %v595
      %v668 = vunpack.c.l.b16 %v596
      %v669 = vunpack.c.l.b16 %v597
      %v670 = vunpack.c.l.b16 %v598
      %v671 = vunpack.c.l.b16 %v599
      %v672 = vunpack.c.l.b16 %v600
      %v673 = vunpack.c.l.b16 %v601
      %v674 = vunpack.c.l.b16 %v602
      %v675 = vunpack.c.l.b16 %v603
      %v676 = vunpack.c.l.b16 %v604
      %v677 = vunpack.c.l.b16 %v605
      %v678 = vunpack.c.l.b16 %v606
      %v679 = vunpack.c.l.b16 %v607
      %v680 = vunpack.c.l.b16 %v608
      %v681 = vunpack.c.l.b16 %v609
      %v682 = vunpack.c.l.b16 %v610
      %v683 = vunpack.c.l.b16 %v611
      %v684 = vunpack.c.l.b16 %v612
      %v685 = vunpack.c.l.b16 %v613
      %v686 = vunpack.c.l.b16 %v614
      %v687 = vunpack.c.l.b16 %v615
      %v688 = vunpack.c.l.b16 %v616
      %v689 = vunpack.c.l.b16 %v617
      %v690 = vunpack.c.l.b16 %v618
      %v691 = vunpack.c.l.b16 %v619
      %v692 = vunpack.c.l.b16 %v620
      %v693 = vunpack.c.l.b16 %v621
      %v694 = vunpack.c.l.b16 %v622
      %v695 = vunpack.c.l.b16 %v623
      %v696 = vunpack.c.l.b16 %v624
      %v697 = vunpack.c.l.b16 %v625
      %v698 = vunpack.c.l.b16 %v626
      %v699 = vunpack.c.l.b16 %v627
      %v700 = vunpack.c.l.b16 %v628
      %v701 = vunpack.c.l.b16 %v629
      %v702 = vunpack.c.l.b16 %v630
      %v703 = vpack.c.b16 %v668, %v667
      %v704 = vpack.c.b16 %v670, %v669
      %v705 = vpack.c.b16 %v672, %v671
      %v706 = vpack.c.b16 %v674, %v673
      %v707 = vpack.c.b16 %v676, %v675
      %v708 = vpack.c.b16 %v678, %v677
      %v709 = vpack.c.b16 %v680, %v679
      %v710 = vpack.c.b16 %v682, %v681
      %v711 = vpack.c.b16 %v684, %v683
      %v712 = vpack.c.b16 %v686, %v685
      %v713 = vpack.c.b16 %v688, %v687
      %v714 = vpack.c.b16 %v690, %v689
      %v715 = vpack.c.b16 %v692, %v691
      %v716 = vpack.c.b16 %v694, %v693
      %v717 = vpack.c.b16 %v696, %v695
      %v718 = vpack.c.b16 %v698, %v697
      %v719 = vpack.c.b16 %v700, %v699
      %v720 = vpack.c.b16 %v702, %v701
      %vm738 = vcmask 244736
      %v740 = vsel %vm738, %v591, 0
      %v743 = vsel %vm738, %v594, 0
      %vm745 = vcmask 1046528
      %v747 = vsel %vm745, %v720, 0
      %749 = vmatpush.bf16.msra.mxu0 %v710
      %750 = vmatpush.bf16.msra.mxu0 %v709
      %751 = vmatpush.bf16.msra.mxu0 %v708
      %752 = vmatpush.bf16.msra.mxu0 %v707
      %753 = vmatpush.bf16.msra.mxu0 %v706
      %754 = vmatpush.bf16.msra.mxu0 %v705
      %755 = vmatpush.bf16.msra.mxu0 %v704
      %756 = vmatpush.bf16.msra.mxu0 %v703
      %757 = vmatmul.bf16.gmra.mxu0 %v589
      %v758 = vpop.f32.mrf.mxu0
      %v759 = vadd.f32 0.0, %v758
      %v760 = vpop.f32.mrf.mxu0
      %v761 = vadd.f32 0.0, %v760
      %762 = vmatmul.bf16.gmra.mxu0 %v592
      %v763 = vpop.f32.mrf.mxu0
      %v764 = vadd.f32 0.0, %v763
      %v765 = vpop.f32.mrf.mxu0
      %v766 = vadd.f32 0.0, %v765
      %767 = vdwg.mxu0
      %768 = vmatpush.bf16.msra.mxu0 %v718
      %769 = vmatpush.bf16.msra.mxu0 %v717
      %770 = vmatpush.bf16.msra.mxu0 %v716
      %771 = vmatpush.bf16.msra.mxu0 %v715
      %772 = vmatpush.bf16.msra.mxu0 %v714
      %773 = vmatpush.bf16.msra.mxu0 %v713
      %774 = vmatpush.bf16.msra.mxu0 %v712
      %775 = vmatpush.bf16.msra.mxu0 %v711
      %776 = vmatmul.bf16.gmra.mxu0 %v590
      %v777 = vpop.f32.mrf.mxu0
      %v778 = vadd.f32 %v759, %v777
      %v779 = vpop.f32.mrf.mxu0
      %v780 = vadd.f32 %v761, %v779
      %781 = vmatmul.bf16.gmra.mxu0 %v593
      %v782 = vpop.f32.mrf.mxu0
      %v783 = vadd.f32 %v764, %v782
      %v784 = vpop.f32.mrf.mxu0
      %v785 = vadd.f32 %v766, %v784
      %786 = vdwg.mxu0
      %787 = vmatpush.bf16.msra.mxu0 0
      %788 = vmatpush.bf16.msra.mxu0 0
      %789 = vmatpush.bf16.msra.mxu0 0
      %790 = vmatpush.bf16.msra.mxu0 0
      %791 = vmatpush.bf16.msra.mxu0 0
      %792 = vmatpush.bf16.msra.mxu0 0
      %793 = vmatpush.bf16.msra.mxu0 %v747
      %794 = vmatpush.bf16.msra.mxu0 %v719
      %795 = vmatmul.bf16.gmra.mxu0 %v740
      %v796 = vpop.f32.mrf.mxu0
      %v797 = vadd.f32 %v778, %v796
      %v798 = vpop.f32.mrf.mxu0
      %v799 = vadd.f32 %v780, %v798
      %800 = vmatmul.bf16.gmra.mxu0 %v743
      %v801 = vpop.f32.mrf.mxu0
      %v802 = vadd.f32 %v783, %v801
      %v803 = vpop.f32.mrf.mxu0
      %v804 = vadd.f32 %v785, %v803
      %805 = vdwg.mxu0
      %v806 = vld [vmem:[%s3] sm:$0x1]
      %v807 = vpack.c.bf16 %v799, %v797
      %v808 = vpack.c.bf16 %v804, %v802
      %vm809 = vcmask 261120
      %v811 = vsel %vm809, %v806, 0
      %813 = vmatpush.bf16.msra.mxu0 0
      %814 = vmatpush.bf16.msra.mxu0 0
      %815 = vmatpush.bf16.msra.mxu0 0
      %816 = vmatpush.bf16.msra.mxu0 0
      %817 = vmatpush.bf16.msra.mxu0 0
      %818 = vmatpush.bf16.msra.mxu0 0
      %819 = vmatpush.bf16.msra.mxu0 %v808
      %820 = vmatpush.bf16.msra.mxu0 %v807
      %821 = vmatmul.bf16.gmra.mxu0 %v811
      %v822 = vpop.f32.mrf.mxu0
      %v823 = vadd.f32 0.0, %v822
      %v824 = vpop.f32.mrf.mxu0
      %825 = vdwg.mxu0
      %vm826 = vcmask 1024
      %827 = vst.msk [vmem:[%s276] sm:$0x3] %vm826, %v823
      %p828 = scmp.lt.s32.totalorder %s20, 1
      %s829 = scalar_select %p828, %s20, 1
      %p830 = scmp.lt.s32.totalorder %s21, 0
      %s831 = scalar_select %p830, %s21, 0
      %s832 = sadd.s32 %s831, %s829
      %s833 = smul.addr %s832, 2
      %s834 = scalar_lea.vmem %s5, %s833
      // Predicated region
      $region41: #{hepa_classifier_forward.1} parent=39 // pred_check
        %p835 = pneg %p165
      $region42: #{hepa_classifier_forward.1} parent=39 // pred_check_branch
        %837 = sbr.rel (%p835) target = $region44
      $region43: #{hepa_classifier_forward.1} parent=39 // pred_region
        _
      $region44: #{hepa_classifier_forward.1} parent=39 // pred_fallthru
        _
    $region40: #{hepa_classifier_forward.1} parent=5 // pred_fallthru
      _
    %p838 = scmp.le.s32.totalorder 2, %s11
    // Predicated region
    $region45: #{hepa_classifier_forward.1} parent=5 // pred_check
      %p839 = pneg %p838
    $region46: #{hepa_classifier_forward.1} parent=5 // pred_check_branch
      %841 = sbr.rel (%p839) target = $region48
    $region47: #{hepa_classifier_forward.1} parent=5 // pred_region
      %s842 = ssub.s32 %s11, 2
      // Predicated region
      $region49: #{hepa_classifier_forward.1} parent=47 // pred_check
        %p843 = pneg %p171
      $region50: #{hepa_classifier_forward.1} parent=47 // pred_check_branch
        %845 = sbr.rel (%p843) target = $region52
      $region51: #{hepa_classifier_forward.1} parent=47 // pred_region
        %p846 = scmp.lt.s32.totalorder %s22, 1
        %s847 = scalar_select %p846, %s22, 1
        %p848 = scmp.lt.s32.totalorder %s23, 0
        %s849 = scalar_select %p848, %s23, 0
        %s850 = sadd.s32 %s849, %s847
        %s851 = smul.addr %s850, 2
        %s852 = scalar_lea.vmem %s5, %s851
      $region52: #{hepa_classifier_forward.1} parent=47 // pred_fallthru
        _
    $region48: #{hepa_classifier_forward.1} parent=5 // pred_fallthru
      _
  $region6: #{hepa_classifier_forward.1} parent=0 // loop_footer
    %s15 = sadd.s32 1, %s11
  $region7: #{hepa_classifier_forward.1} parent=0 // loop_footer_branch
    %10 = sbr.rel target = $region3
  $region8: #{hepa_classifier_forward.1} parent=0 // loop_exit
    _

</llo_original>
